<compile_context>
chip_gen: v5e
topology: v5e:2x2
jax: 0.10.0
libtpu: 0.0.40
codegen_flags: <defaults>
</compile_context>

<pallas_src>
import functools

import jax
import jax.numpy as jnp
from jax.experimental import pallas as pl
from jax.experimental.pallas import tpu as pltpu


def _rope_kernel(inv_freq_ref, col_off_ref, o_ref, *, rows_per_out_row):
    # inv_freq_ref: (1, width)  = tile(cat(inv_freq, inv_freq), R)   (resident)
    # col_off_ref:  (1, width)  = repeat(arange(R), d_eff) as f32    (resident)
    # o_ref:        (tile_rows, width) output tile
    tile_rows = o_ref.shape[0]
    base = pl.program_id(0) * tile_rows
    # Global sequence position of lane-group 0 in each output row (exact ints in f32).
    row = (base + jax.lax.broadcasted_iota(jnp.int32, (tile_rows, 1), 0)) * rows_per_out_row
    pos = row.astype(jnp.float32) + col_off_ref[...]          # (tile_rows, width)
    o_ref[...] = (pos * inv_freq_ref[...]).astype(o_ref.dtype)


def make_inv_freq(dim):
    """Mirror of the PyTorch registered buffer."""
    return 1.0 / (10000.0 ** (jnp.arange(0, dim, 2, dtype=jnp.float32) / dim))


def rotary_embedding_forward(inv_freq, max_seq_len, dtype=jnp.float32):
    """Returns the (1, 1, max_seq_len, 2*(dim//2)) rotary embedding table."""
    half = int(inv_freq.shape[0])
    d_eff = 2 * half
    n = int(max_seq_len)
    itemsize = jnp.dtype(dtype).itemsize

    # ---- lane densification: fold R sequence rows into the lane dimension ----
    # Pick the largest R that divides n with R*d_eff <= 2048 lanes, preferring
    # widths that are multiples of 128 (unmasked stores).  All static Python.
    max_width = 2048
    best_r, best_key = 1, (-1, -1)
    for r in range(1, max(1, max_width // d_eff) + 1):
        if n % r != 0:
            continue
        w = r * d_eff
        key = (1 if (w % 128 == 0) else 0, w)
        if key > best_key:
            best_key, best_r = key, r
    R = best_r
    width = R * d_eff
    n_rows = n // R

    # Tiny resident rows (folded concat + per-lane position offset).
    inv_freq_full = jnp.concatenate([inv_freq, inv_freq]).astype(jnp.float32)     # (d_eff,)
    inv_freq_wide = jnp.tile(inv_freq_full, (R,)).reshape(1, width)               # (1, width)
    col_off = jnp.repeat(jnp.arange(R, dtype=jnp.float32), d_eff).reshape(1, width)

    # ---- tile sizing by bytes (~2 MiB/tile, double-buffered -> ~4 MiB VMEM) ----
    sub = max(8, 32 // itemsize)              # sublane granule: f32->8, bf16->16, int8->32
    row_bytes = width * itemsize
    target_tile_bytes = 2 * 1024 * 1024
    tile_rows = max(sub, (target_tile_bytes // row_bytes) // sub * sub)
    if tile_rows >= n_rows:
        if n_rows >= 2 * sub:
            # Split into >=2 tiles so v7x can shard the row grid across both TensorCores.
            tile_rows = pl.cdiv(pl.cdiv(n_rows, 2), sub) * sub
        else:
            tile_rows = n_rows                # full-dim block (allowed for any size)
    grid0 = pl.cdiv(n_rows, tile_rows)        # ragged trailing block is masked by Pallas

    out = pl.pallas_call(
        functools.partial(_rope_kernel, rows_per_out_row=R),
        out_shape=jax.ShapeDtypeStruct((n_rows, width), dtype),
        grid=(grid0,),
        in_specs=[
            # constant index_map -> fetched once, stays resident in VMEM
            pl.BlockSpec((1, width), lambda i: (0, 0)),
            pl.BlockSpec((1, width), lambda i: (0, 0)),
        ],
        out_specs=pl.BlockSpec((tile_rows, width), lambda i: (i, 0)),
        compiler_params=pltpu.CompilerParams(
            dimension_semantics=("parallel",),
        ),
    )(inv_freq_wide, col_off)

    # (n_rows, R*d_eff) row-major is bit-identical to (n, d_eff): reshape is free.
    return out.reshape(1, 1, n, d_eff)


def _rope_ref(max_seq_len, dim):
    inv_freq = make_inv_freq(dim)
    t = jnp.arange(max_seq_len, dtype=jnp.float32)
    freqs = jnp.einsum("i,j->ij", t, inv_freq)
    emb = jnp.concatenate([freqs, freqs], axis=-1)
    return emb[None, None, :, :]


if __name__ == "__main__":
    # RotaryEmbedding.forward takes no tensor inputs (only max_seq_len); the key
    # is created only to honor the deterministic-setup convention.
    _ = jax.random.PRNGKey(0)

    # Small shapes consistent with the module: (dim, max_seq_len).
    # (64, 2048) exercises the multi-tile / multi-grid-step path.
    for dim, seq in [(64, 16), (128, 50), (64, 50), (64, 2048)]:
        inv_freq = make_inv_freq(dim)
        out = jax.block_until_ready(rotary_embedding_forward(inv_freq, seq))
        ref = _rope_ref(seq, dim)
        assert out.shape == (1, 1, seq, 2 * (dim // 2)), f"bad shape {out.shape}"
        assert jnp.allclose(out, ref, atol=1e-5, rtol=1e-5), f"mismatch dim={dim} seq={seq}"

    # bf16 output path (consumer dtype): halves HBM stores; looser tolerance.
    out_bf16 = jax.block_until_ready(
        rotary_embedding_forward(make_inv_freq(64), 2048, dtype=jnp.bfloat16))
    ref = _rope_ref(2048, 64)
    assert jnp.allclose(out_bf16.astype(jnp.float32), ref, atol=1e-1, rtol=2e-2), "bf16 mismatch"

    print("KERNEL_OK")
</pallas_src>

<mosaic_0001>
module attributes {stable_mosaic.version = 11 : i64} {
  func.func @_rope_kernel(%arg0: i32, %arg1: memref<1x1024xf32, #tpu.memory_space<vmem>>, %arg2: memref<1x1024xf32, #tpu.memory_space<vmem>>, %arg3: memref<1x1024xf32, #tpu.memory_space<vmem>>) attributes {dimension_semantics = [#tpu.dimension_semantics<parallel>], iteration_bounds = array<i64: 1>, scalar_prefetch = 0 : i64, scratch_operands = 0 : i64, tpu.core_type = #tpu.core_type<tc>, window_params = [{pipeline_mode = #tpu.pipeline_mode<synchronous>, transform_indices = @transform_0, window_bounds = array<i64: 1, 1024>}, {pipeline_mode = #tpu.pipeline_mode<synchronous>, transform_indices = @transform_1, window_bounds = array<i64: 1, 1024>}, {transform_indices = @transform_2, window_bounds = array<i64: 1, 1024>}]} {
    %c1_i32 = arith.constant 1 : i32
    %0 = arith.muli %arg0, %c1_i32 : i32
    %1 = tpu.iota {dimensions = array<i32: 0>} : vector<1x1xi32>
    %2 = vector.broadcast %0 : i32 to vector<1x1xi32>
    %3 = arith.addi %2, %1 : vector<1x1xi32>
    %c16_i32 = arith.constant 16 : i32
    %4 = vector.broadcast %c16_i32 : i32 to vector<1x1xi32>
    %5 = arith.muli %3, %4 : vector<1x1xi32>
    %6 = arith.sitofp %5 : vector<1x1xi32> to vector<1x1xf32>
    %c0 = arith.constant 0 : index
    %c0_0 = arith.constant 0 : index
    %7 = vector.load %arg2[%c0, %c0_0] : memref<1x1024xf32, #tpu.memory_space<vmem>>, vector<1x1024xf32>
    %8 = vector.broadcast %6 : vector<1x1xf32> to vector<1x1024xf32>
    %9 = arith.addf %8, %7 : vector<1x1024xf32>
    %c0_1 = arith.constant 0 : index
    %c0_2 = arith.constant 0 : index
    %10 = vector.load %arg1[%c0_1, %c0_2] : memref<1x1024xf32, #tpu.memory_space<vmem>>, vector<1x1024xf32>
    %11 = arith.mulf %9, %10 : vector<1x1024xf32>
    %c0_3 = arith.constant 0 : index
    %c0_4 = arith.constant 0 : index
    %12 = vector.load %arg3[%c0_3, %c0_4] : memref<1x1024xf32, #tpu.memory_space<vmem>>, vector<1x1024xf32>
    tpu.vector_store %arg3[%c0_3, %c0_4], %11 {strides = array<i32>} : memref<1x1024xf32, #tpu.memory_space<vmem>>, vector<1x1024xf32>,
    return
  }
  func.func @transform_0(%arg0: i32) -> (i32, i32) {
    %c0_i32 = arith.constant 0 : i32
    %c0_i32_0 = arith.constant 0 : i32
    %c0_i32_1 = arith.constant 0 : i32
    return %c0_i32, %c0_i32_0 : i32, i32
  }
  func.func @transform_1(%arg0: i32) -> (i32, i32) {
    %c0_i32 = arith.constant 0 : i32
    %c0_i32_0 = arith.constant 0 : i32
    %c0_i32_1 = arith.constant 0 : i32
    return %c0_i32, %c0_i32_0 : i32, i32
  }
  func.func @transform_2(%arg0: i32) -> (i32, i32) {
    %c0_i32 = arith.constant 0 : i32
    %c0_i32_0 = arith.constant 0 : i32
    return %arg0, %c0_i32 : i32, i32
  }
}

</mosaic_0001>

<llo_original>
// kernel: tpu_custom_call.1
$region0: #{tpu_custom_call.1}
  #allocation0 [shape = 'u32[]', space=smem, size = 0x4, offset = 0x4, fixed_abs, tag = 'smem constant byte address 0x4 - core index']
  #allocation1 [shape = 'u32[72,128]{1,0:T(1,128)}', space=vmem, size = 0x9000, scoped, tag = 'internal scratch']
  %s0 = inlined_call_operand.hbm [shape: f32[1,1024], index: 0, kind: input, shape index: {}]
  %s1 = inlined_call_operand.hbm [shape: f32[1,1024], index: 1, kind: input, shape index: {}]
  %s2 = inlined_call_operand.hbm [shape: f32[1,1024], index: 2, kind: output, shape index: {}]
  %s3 = sld [smem:[#allocation0]]
  $region26: #{tpu_custom_call.1} parent=0
    _
  %s5 = ssub.s32 1, %s3
  %s6 = scalar_select 0, %s5, %s3
  $region1: #{tpu_custom_call.1} parent=0
    #allocation2 [shape = 'u8[4096]{0}', space=vmem, size = 0x1000, scoped, tag = 'input window, operand 0, single buffered']
    #allocation3 [shape = 's32[1]{0}', space=sflag, size = 0x4, scoped, tag = 'scoped memory for tpu_custom_call.1']
    #allocation4 [shape = 's32[1]{0}', space=sflag, size = 0x4, scoped, tag = 'scoped memory for tpu_custom_call.1']
    #allocation5 [shape = 'u8[4096]{0}', space=vmem, size = 0x1000, scoped, tag = 'input window, operand 1, single buffered']
    #allocation6 [shape = 's32[1]{0}', space=sflag, size = 0x4, scoped, tag = 'scoped memory for tpu_custom_call.1']
    #allocation7 [shape = 'u8[4096]{0}', space=vmem, size = 0x1000, scoped, tag = 'output window, operand 0, single buffered']
    %7 = vsyncpa [#allocation3], 0
    %8 = vsyncpa [#allocation6], 0
    %9 = vsyncpa [#allocation4], 0
    // Predicated region
    $region2: #{tpu_custom_call.1} parent=1 // pred_check
      _
    $region3: #{tpu_custom_call.1} parent=1 // pred_check_branch
      %11 = sbr.rel (0) target = $region5
    $region4: #{tpu_custom_call.1} parent=1 // pred_region
      %13 = vsyncadd [#allocation3], 0
      %s15 = sshll.u32 %s0, 4
      %s16 = int_to_ptr.hbm [resolvable:$true] %s15
      %s17 = sshll.u32 [#allocation2], 4
      %s18 = int_to_ptr.vmem [resolvable:$true] %s17
      %20 = dma.hbm_to_vmem [thread:$0]  %s16, 128, %s18, [#allocation3]
    $region5: #{tpu_custom_call.1} parent=1 // pred_fallthru
      _
    // Predicated region
    $region6: #{tpu_custom_call.1} parent=1 // pred_check
      _
    $region7: #{tpu_custom_call.1} parent=1 // pred_check_branch
      %22 = sbr.rel (0) target = $region9
    $region8: #{tpu_custom_call.1} parent=1 // pred_region
      %24 = vsyncadd [#allocation6], 0
      %s26 = sshll.u32 %s1, 4
      %s27 = int_to_ptr.hbm [resolvable:$true] %s26
      %s28 = sshll.u32 [#allocation5], 4
      %s29 = int_to_ptr.vmem [resolvable:$true] %s28
      %31 = dma.hbm_to_vmem [thread:$0]  %s27, 128, %s29, [#allocation6]
    $region9: #{tpu_custom_call.1} parent=1 // pred_fallthru
      _
    // Predicated region
    $region10: #{tpu_custom_call.1} parent=1 // pred_check
      _
    $region11: #{tpu_custom_call.1} parent=1 // pred_check_branch
      %33 = sbr.rel (0) target = $region13
    $region12: #{tpu_custom_call.1} parent=1 // pred_region
      %35 = dma.done [#allocation3], 128
    $region13: #{tpu_custom_call.1} parent=1 // pred_fallthru
      _
    // Predicated region
    $region14: #{tpu_custom_call.1} parent=1 // pred_check
      _
    $region15: #{tpu_custom_call.1} parent=1 // pred_check_branch
      %37 = sbr.rel (0) target = $region17
    $region16: #{tpu_custom_call.1} parent=1 // pred_region
      %39 = dma.done [#allocation6], 128
    $region17: #{tpu_custom_call.1} parent=1 // pred_fallthru
      _
    %v40 = vlaneseq
    %v41 = vshrl.u32 %v40, 7
    %v42 = vstv 0
    %v43 = vadd.s32 %v42, %v41
    %v44 = vmul.u32 %v43, 16
    %v45 = vcvt.s32.f32 %v44
    %v46 = vld [vmem:[#allocation5] sm:$0xff]
    %v48 = vperm.slane %v46, 0
    %v49 = vperm.slane %v46, 1
    %v50 = vperm.slane %v46, 2
    %v51 = vperm.slane %v46, 3
    %v52 = vperm.slane %v46, 4
    %v53 = vperm.slane %v46, 5
    %v54 = vperm.slane %v46, 6
    %v55 = vperm.slane %v46, 7
    %v64 = vadd.f32 %v45, %v48
    %v65 = vadd.f32 %v45, %v49
    %v66 = vadd.f32 %v45, %v50
    %v67 = vadd.f32 %v45, %v51
    %v68 = vadd.f32 %v45, %v52
    %v69 = vadd.f32 %v45, %v53
    %v70 = vadd.f32 %v45, %v54
    %v71 = vadd.f32 %v45, %v55
    %v72 = vld [vmem:[#allocation2] sm:$0xff]
    %v74 = vperm.slane %v72, 0
    %v75 = vperm.slane %v72, 1
    %v76 = vperm.slane %v72, 2
    %v77 = vperm.slane %v72, 3
    %v78 = vperm.slane %v72, 4
    %v79 = vperm.slane %v72, 5
    %v80 = vperm.slane %v72, 6
    %v81 = vperm.slane %v72, 7
    %v90 = vmul.f32 %v64, %v74
    %v91 = vmul.f32 %v65, %v75
    %v92 = vmul.f32 %v66, %v76
    %v93 = vmul.f32 %v67, %v77
    %v94 = vmul.f32 %v68, %v78
    %v95 = vmul.f32 %v69, %v79
    %v96 = vmul.f32 %v70, %v80
    %v97 = vmul.f32 %v71, %v81
    %v106 = vrot.slane %v91, 7
    %v107 = vrot.slane %v92, 6
    %v108 = vrot.slane %v93, 5
    %v109 = vrot.slane %v94, 4
    %v110 = vrot.slane %v95, 3
    %v111 = vrot.slane %v96, 2
    %v112 = vrot.slane %v97, 1
    %vm113 = vcmask 1040384
    %v114 = vsel %vm113, %v90, %v106
    %vm115 = vcmask 1042434
    %v116 = vsel %vm115, %v107, %v108
    %vm117 = vcmask 1041408
    %v118 = vsel %vm117, %v114, %v116
    %vm119 = vcmask 1044484
    %v120 = vsel %vm119, %v109, %v110
    %vm121 = vcmask 1046534
    %v122 = vsel %vm121, %v111, %v112
    %vm123 = vcmask 1045508
    %v124 = vsel %vm123, %v120, %v122
    %vm125 = vcmask 1043456
    %v126 = vsel %vm125, %v118, %v124
    %128 = vst [vmem:[#allocation7] sm:$0xff] %v126
    // Predicated region
    $region18: #{tpu_custom_call.1} parent=1 // pred_check
      _
    $region19: #{tpu_custom_call.1} parent=1 // pred_check_branch
      %130 = sbr.rel (0) target = $region21
    $region20: #{tpu_custom_call.1} parent=1 // pred_region
      %132 = vsyncadd [#allocation4], 0
      %s134 = sshll.u32 [#allocation7], 4
      %s135 = int_to_ptr.vmem [resolvable:$true] %s134
      %s136 = sshll.u32 %s2, 4
      %s137 = int_to_ptr.hbm [resolvable:$true] %s136
      %139 = dma.vmem_to_hbm [thread:$0]  %s135, 128, %s137, [#allocation4]
    $region21: #{tpu_custom_call.1} parent=1 // pred_fallthru
      _
    // Predicated region
    $region22: #{tpu_custom_call.1} parent=1 // pred_check
      _
    $region23: #{tpu_custom_call.1} parent=1 // pred_check_branch
      %141 = sbr.rel (0) target = $region25
    $region24: #{tpu_custom_call.1} parent=1 // pred_region
      %143 = dma.done [#allocation4], 128
    $region25: #{tpu_custom_call.1} parent=1 // pred_fallthru
      _
    %144 = vsyncpa [#allocation3], 1
    %145 = vsyncpa [#allocation6], 1
    %146 = vsyncpa [#allocation4], 1

</llo_original>
